<compile_context>
chip_gen: v6e
topology: v6e:2x2x1
jax: 0.10.0
libtpu: 0.0.40
codegen_flags: <defaults>
</compile_context>

<pallas_src>
import functools

import jax
import jax.numpy as jnp
from jax import lax
from jax.experimental import pallas as pl
from jax.experimental.pallas import tpu as pltpu


_CHAN_CHUNK = 8  # channels per chunk in the chunked reduction path


def _round_up(x, m):
    return ((x + m - 1) // m) * m


def _channel_sq_sum(im_ref, lid_ref, n_channels, tile_rows):
    """sum_c (im - lid)^2 over the channel axis -> (tile_rows, 128) f32."""
    if n_channels <= _CHAN_CHUNK:
        # Small C: one fused, full-width pass over the whole block.
        d = im_ref[...].astype(jnp.float32) - lid_ref[...].astype(jnp.float32)
        return jnp.sum(d * d, axis=(0, 1))          # (tile_rows, 128)

    n_full = n_channels // _CHAN_CHUNK
    rem = n_channels % _CHAN_CHUNK

    def body(k, partial):
        c0 = k * _CHAN_CHUNK
        d = (im_ref[0, pl.ds(c0, _CHAN_CHUNK)].astype(jnp.float32)
             - lid_ref[0, pl.ds(c0, _CHAN_CHUNK)].astype(jnp.float32))
        return partial + jnp.sum(d * d, axis=0)     # (tile_rows, 128)

    partial = lax.fori_loop(
        0, n_full, body, jnp.zeros((tile_rows, 128), jnp.float32))

    if rem:
        c0 = n_full * _CHAN_CHUNK
        d = (im_ref[0, pl.ds(c0, rem)].astype(jnp.float32)
             - lid_ref[0, pl.ds(c0, rem)].astype(jnp.float32))
        partial = partial + jnp.sum(d * d, axis=0)
    return partial


def _contrastive_resnet_kernel(margin_ref, labels_ref, im_ref, lid_ref,
                               out_ref, acc_ref, *, n_channels, tile_rows,
                               hw, needs_mask):
    # margin_ref : (1,)  f32 SMEM
    # labels_ref : (N,)  f32 SMEM
    # im_ref/lid_ref : (1, C, tile_rows, 128) VMEM blocks (native dtype)
    # out_ref    : (1, 1, 128) f32 VMEM block (per-batch partial sums)
    # acc_ref    : (tile_rows, 128) f32 VMEM scratch (persists over j axis)
    i = pl.program_id(0)   # batch index      ("parallel")
    j = pl.program_id(1)   # spatial tile idx ("arbitrary", innermost)

    @pl.when(j == 0)
    def _init():
        acc_ref[...] = jnp.zeros_like(acc_ref)

    sq_sum = _channel_sq_sum(im_ref, lid_ref, n_channels, tile_rows)

    lab = labels_ref[i]          # scalar f32
    margin = margin_ref[0]       # scalar f32

    # Positive branch uses sq_sum (== dist^2) directly; sqrt only feeds hinge.
    dist = jnp.sqrt(sq_sum)                       # (tile_rows, 128), EUP
    hinge = jnp.maximum(margin - dist, 0.0)
    per_elem = sq_sum * lab + (hinge * hinge) * (1.0 - lab)

    if needs_mask:
        # Zero out padded spatial positions (they would otherwise contribute
        # margin^2*(1-label) through the negative branch).
        row_ids = lax.broadcasted_iota(jnp.int32, (tile_rows, 128), 0)
        lane_ids = lax.broadcasted_iota(jnp.int32, (tile_rows, 128), 1)
        idx = (j * tile_rows + row_ids) * 128 + lane_ids
        per_elem = jnp.where(idx < hw, per_elem, 0.0)

    acc_ref[...] += per_elem

    @pl.when(j == pl.num_programs(1) - 1)
    def _finalize():
        # One sublane fold per batch; lane reduction finishes outside.
        out_ref[...] = jnp.sum(acc_ref[...], axis=0, keepdims=True)[None]


def _pick_tile_rows(r, c, itemsize, target_bytes=4 * 1024 * 1024):
    """Largest valid sublane tile (multiple of 8, or full r) under target."""
    if r <= 8:
        return r
    bytes_per_row = c * 128 * itemsize
    max_rows = max(8, target_bytes // max(1, bytes_per_row))
    best = 8
    t = 8
    while t <= r:
        if r % t == 0 and t <= max_rows:
            best = t
        t += 8
    return best


def contrastive_loss_resnet(output_im, output_lid, labels, margin=4.0):
    """Pallas implementation of ContrastiveLoss(mode='resnet').forward.

    output_im, output_lid : (N, C, H, W)   (any float dtype; bf16 OK)
    labels                : (N,)
    returns               : scalar f32 loss
    """
    N, C, H, W = output_im.shape
    HW = H * W

    # Lane-dense layout: pad spatial axis to a multiple of 128 (and keep the
    # row count a multiple of 8 once it exceeds 8) then fold into (R, 128).
    HW_pad = _round_up(HW, 128)
    R = HW_pad // 128
    if R > 8 and R % 8 != 0:
        R = _round_up(R, 8)
        HW_pad = R * 128

    im = output_im.reshape(N, C, HW)
    lid = output_lid.reshape(N, C, HW)
    if HW_pad != HW:
        pad = HW_pad - HW
        im = jnp.pad(im, ((0, 0), (0, 0), (0, pad)))
        lid = jnp.pad(lid, ((0, 0), (0, 0), (0, pad)))
    im = im.reshape(N, C, R, 128)
    lid = lid.reshape(N, C, R, 128)

    labels_f = labels.astype(jnp.float32).reshape(N)
    margin_arr = jnp.full((1,), margin, dtype=jnp.float32)

    itemsize = jnp.dtype(im.dtype).itemsize
    tile_rows = _pick_tile_rows(R, C, itemsize)
    n_tiles = R // tile_rows

    kernel = functools.partial(
        _contrastive_resnet_kernel,
        n_channels=C,
        tile_rows=tile_rows,
        hw=HW,
        needs_mask=(HW_pad != HW),
    )

    grid_spec = pltpu.PrefetchScalarGridSpec(
        num_scalar_prefetch=0,
        grid=(N, n_tiles),
        in_specs=[
            pl.BlockSpec(memory_space=pltpu.MemorySpace.SMEM),          # margin
            pl.BlockSpec(memory_space=pltpu.MemorySpace.SMEM),          # labels
            pl.BlockSpec((1, C, tile_rows, 128),
                         lambda i, j: (i, 0, j, 0)),                    # im
            pl.BlockSpec((1, C, tile_rows, 128),
                         lambda i, j: (i, 0, j, 0)),                    # lid
        ],
        out_specs=pl.BlockSpec((1, 1, 128), lambda i, j: (i, 0, 0)),
        scratch_shapes=[pltpu.VMEM((tile_rows, 128), jnp.float32)],
    )

    cost = pl.CostEstimate(
        flops=int(3 * N * C * HW_pad + 7 * N * HW_pad),
        transcendentals=int(N * HW_pad),             # sqrt per spatial element
        bytes_accessed=int(2 * N * C * HW_pad * itemsize
                           + 4 * (N * 128 + N + 1)),
    )

    partials = pl.pallas_call(
        kernel,
        out_shape=jax.ShapeDtypeStruct((N, 1, 128), jnp.float32),
        grid_spec=grid_spec,
        compiler_params=pltpu.CompilerParams(
            # Batch axis is independent (per-batch partial output) -> parallel
            # so v7x megacore can shard it; spatial axis is a reduction.
            dimension_semantics=("parallel", "arbitrary"),
            vmem_limit_bytes=48 * 1024 * 1024,
        ),
        cost_estimate=cost,
    )(margin_arr, labels_f, im, lid)

    # Final reduction of the N per-batch (1,128) partials + mean scaling.
    return jnp.sum(partials) * (1.0 / float(N * HW))


def _reference_loss(output_im, output_lid, labels, margin=4.0):
    diff = output_im.astype(jnp.float32) - output_lid.astype(jnp.float32)
    dist = jnp.sqrt(jnp.sum(diff * diff, axis=1))             # (N, H, W)
    lab = labels.astype(jnp.float32)[:, None, None]
    pos = dist ** 2 * lab
    neg = jnp.maximum(margin - dist, 0.0) ** 2 * (1.0 - lab)
    return jnp.mean(pos + neg)


if __name__ == "__main__":
    key = jax.random.PRNGKey(0)
    k1, k2, k3 = jax.random.split(key, 3)

    N, C, H, W = 2, 4, 16, 16
    output_im = jax.random.normal(k1, (N, C, H, W), dtype=jnp.float32)
    output_lid = jax.random.normal(k2, (N, C, H, W), dtype=jnp.float32)
    labels = jax.random.bernoulli(k3, 0.5, (N,)).astype(jnp.float32)

    loss = contrastive_loss_resnet(output_im, output_lid, labels, margin=4.0)
    loss = jax.block_until_ready(loss)

    ref = jax.block_until_ready(
        _reference_loss(output_im, output_lid, labels, margin=4.0))
    assert jnp.allclose(loss, ref, rtol=1e-5, atol=1e-5), (loss, ref)

    print("KERNEL_OK")
</pallas_src>

<mosaic_0001>
module attributes {stable_mosaic.version = 11 : i64} {
  func.func @_contrastive_resnet_kernel(%arg0: i32, %arg1: i32, %arg2: memref<1xf32, #tpu.memory_space<smem>>, %arg3: memref<2xf32, #tpu.memory_space<smem>>, %arg4: memref<1x4x2x128xf32, #tpu.memory_space<vmem>>, %arg5: memref<1x4x2x128xf32, #tpu.memory_space<vmem>>, %arg6: memref<1x1x128xf32, #tpu.memory_space<vmem>>, %arg7: memref<2x128xf32, #tpu.memory_space<vmem>>) attributes {dimension_semantics = [#tpu.dimension_semantics<parallel>, #tpu.dimension_semantics<arbitrary>], iteration_bounds = array<i64: 2, 1>, scalar_prefetch = 0 : i64, scratch_operands = 1 : i64, tpu.core_type = #tpu.core_type<tc>, window_params = [{transform_indices = @transform_0, window_bounds = array<i64: 1>}, {transform_indices = @transform_1, window_bounds = array<i64: 2>}, {transform_indices = @transform_2, window_bounds = array<i64: 1, 4, 2, 128>}, {transform_indices = @transform_3, window_bounds = array<i64: 1, 4, 2, 128>}, {transform_indices = @transform_4, window_bounds = array<i64: 1, 1, 128>}]} {
    %c0_i32 = arith.constant 0 : i32
    %0 = arith.cmpi eq, %arg1, %c0_i32 : i32
    %1 = arith.extui %0 : i1 to i32
    %c0_i32_0 = arith.constant 0 : i32
    %2 = arith.cmpi ne, %1, %c0_i32_0 : i32
    scf.if %2 {
      %cst_17 = arith.constant 0.000000e+00 : f32
      %29 = vector.broadcast %cst_17 : f32 to vector<2x128xf32>
      %c0_18 = arith.constant 0 : index
      %c0_19 = arith.constant 0 : index
      %30 = vector.load %arg7[%c0_18, %c0_19] : memref<2x128xf32, #tpu.memory_space<vmem>>, vector<2x128xf32>
      tpu.vector_store %arg7[%c0_18, %c0_19], %29 {strides = array<i32>} : memref<2x128xf32, #tpu.memory_space<vmem>>, vector<2x128xf32>,
    } else {
    }
    %c0 = arith.constant 0 : index
    %c0_1 = arith.constant 0 : index
    %c0_2 = arith.constant 0 : index
    %c0_3 = arith.constant 0 : index
    %3 = vector.load %arg4[%c0, %c0_1, %c0_2, %c0_3] : memref<1x4x2x128xf32, #tpu.memory_space<vmem>>, vector<1x4x2x128xf32>
    %c0_4 = arith.constant 0 : index
    %c0_5 = arith.constant 0 : index
    %c0_6 = arith.constant 0 : index
    %c0_7 = arith.constant 0 : index
    %4 = vector.load %arg5[%c0_4, %c0_5, %c0_6, %c0_7] : memref<1x4x2x128xf32, #tpu.memory_space<vmem>>, vector<1x4x2x128xf32>
    %5 = arith.subf %3, %4 : vector<1x4x2x128xf32>
    %6 = arith.mulf %5, %5 : vector<1x4x2x128xf32>
    %cst = arith.constant dense<0.000000e+00> : vector<2x128xf32>
    %7 = vector.multi_reduction <add>, %6, %cst [0, 1] : vector<1x4x2x128xf32> to vector<2x128xf32>
    %8 = arith.index_cast %arg0 : i32 to index
    %9 = memref.load %arg3[%8] : memref<2xf32, #tpu.memory_space<smem>>
    %c0_8 = arith.constant 0 : index
    %10 = memref.load %arg2[%c0_8] : memref<1xf32, #tpu.memory_space<smem>>
    %11 = math.sqrt %7 : vector<2x128xf32>
    %12 = vector.broadcast %10 : f32 to vector<2x128xf32>
    %13 = arith.subf %12, %11 : vector<2x128xf32>
    %cst_9 = arith.constant 0.000000e+00 : f32
    %14 = vector.broadcast %cst_9 : f32 to vector<2x128xf32>
    %15 = arith.maximumf %13, %14 : vector<2x128xf32>
    %16 = vector.broadcast %9 : f32 to vector<2x128xf32>
    %17 = arith.mulf %7, %16 : vector<2x128xf32>
    %18 = arith.mulf %15, %15 : vector<2x128xf32>
    %cst_10 = arith.constant 1.000000e+00 : f32
    %19 = arith.subf %cst_10, %9 : f32
    %20 = vector.broadcast %19 : f32 to vector<2x128xf32>
    %21 = arith.mulf %18, %20 : vector<2x128xf32>
    %22 = arith.addf %17, %21 : vector<2x128xf32>
    %c0_11 = arith.constant 0 : index
    %c0_12 = arith.constant 0 : index
    %23 = vector.load %arg7[%c0_11, %c0_12] : memref<2x128xf32, #tpu.memory_space<vmem>>, vector<2x128xf32>
    %24 = arith.addf %23, %22 : vector<2x128xf32>
    %c0_13 = arith.constant 0 : index
    %c0_14 = arith.constant 0 : index
    %25 = vector.load %arg7[%c0_13, %c0_14] : memref<2x128xf32, #tpu.memory_space<vmem>>, vector<2x128xf32>
    tpu.vector_store %arg7[%c0_13, %c0_14], %24 {strides = array<i32>} : memref<2x128xf32, #tpu.memory_space<vmem>>, vector<2x128xf32>,
    %c0_i32_15 = arith.constant 0 : i32
    %26 = arith.cmpi eq, %arg1, %c0_i32_15 : i32
    %27 = arith.extui %26 : i1 to i32
    %c0_i32_16 = arith.constant 0 : i32
    %28 = arith.cmpi ne, %27, %c0_i32_16 : i32
    scf.if %28 {
      %c0_17 = arith.constant 0 : index
      %c0_18 = arith.constant 0 : index
      %29 = vector.load %arg7[%c0_17, %c0_18] : memref<2x128xf32, #tpu.memory_space<vmem>>, vector<2x128xf32>
      %cst_19 = arith.constant dense<0.000000e+00> : vector<128xf32>
      %30 = vector.multi_reduction <add>, %29, %cst_19 [0] : vector<2x128xf32> to vector<128xf32>
      %31 = vector.shape_cast %30 : vector<128xf32> to vector<1x128xf32>
      %32 = vector.shape_cast %31 : vector<1x128xf32> to vector<1x1x128xf32>
      %c0_20 = arith.constant 0 : index
      %c0_21 = arith.constant 0 : index
      %c0_22 = arith.constant 0 : index
      %33 = vector.load %arg6[%c0_20, %c0_21, %c0_22] : memref<1x1x128xf32, #tpu.memory_space<vmem>>, vector<1x1x128xf32>
      tpu.vector_store %arg6[%c0_20, %c0_21, %c0_22], %32 {strides = array<i32>} : memref<1x1x128xf32, #tpu.memory_space<vmem>>, vector<1x1x128xf32>,
    } else {
    }
    return
  }
  func.func @transform_0(%arg0: i32, %arg1: i32) -> i32 {
    %c0_i32 = arith.constant 0 : i32
    %c0_i32_0 = arith.constant 0 : i32
    return %c0_i32 : i32
  }
  func.func @transform_1(%arg0: i32, %arg1: i32) -> i32 {
    %c0_i32 = arith.constant 0 : i32
    %c0_i32_0 = arith.constant 0 : i32
    return %c0_i32 : i32
  }
  func.func @transform_2(%arg0: i32, %arg1: i32) -> (i32, i32, i32, i32) {
    %c0_i32 = arith.constant 0 : i32
    %c0_i32_0 = arith.constant 0 : i32
    %c0_i32_1 = arith.constant 0 : i32
    return %arg0, %c0_i32, %arg1, %c0_i32_0 : i32, i32, i32, i32
  }
  func.func @transform_3(%arg0: i32, %arg1: i32) -> (i32, i32, i32, i32) {
    %c0_i32 = arith.constant 0 : i32
    %c0_i32_0 = arith.constant 0 : i32
    %c0_i32_1 = arith.constant 0 : i32
    return %arg0, %c0_i32, %arg1, %c0_i32_0 : i32, i32, i32, i32
  }
  func.func @transform_4(%arg0: i32, %arg1: i32) -> (i32, i32, i32) {
    %c0_i32 = arith.constant 0 : i32
    %c0_i32_0 = arith.constant 0 : i32
    %c0_i32_1 = arith.constant 0 : i32
    return %arg0, %c0_i32, %c0_i32_0 : i32, i32, i32
  }
}

</mosaic_0001>

<llo_original>
// kernel: tpu_custom_call.1
$region0: #{tpu_custom_call.1}
  #allocation0 [shape = 'u32[]', space=smem, size = 0x4, offset = 0x4, fixed_abs, tag = 'smem constant byte address 0x4 - core index']
  #allocation1 [shape = 'u32[144,128]{1,0:T(1,128)}', space=vmem, size = 0x12000, scoped, tag = 'internal scratch']
  #allocation2 [shape = 'f32[2,128]{1,0:T(2,128)}', space=vmem, size = 0x400, scoped, tag = 'scratch operand']
  #allocation3 [shape = 'f32[1]{0:T(128)S(6)}', space=smem, size = 0x200, scoped, tag = 'scoped memory for tpu_custom_call.1']
  %s0 = inlined_call_operand.<no memory space> [shape: f32[1], index: 0, kind: input, shape index: {}]
  %s1 = inlined_call_operand.vmem [shape: f32[2], index: 1, kind: input, shape index: {}]
  %s2 = inlined_call_operand.hbm [shape: f32[2,4,2,128], index: 2, kind: input, shape index: {}]
  %s3 = inlined_call_operand.hbm [shape: f32[2,4,2,128], index: 3, kind: input, shape index: {}]
  %s4 = inlined_call_operand.hbm [shape: f32[2,1,128], index: 4, kind: output, shape index: {}]
  %s5 = sld [smem:[#allocation0]]
  $region69: #{tpu_custom_call.1} parent=0
    _
  %s7 = ssub.s32 1, %s5
  %s8 = scalar_select 0, %s7, %s5
  %9 = sst [smem:[#allocation3]] %s0
  $region1: #{tpu_custom_call.1} parent=0
    #allocation4 [shape = 'u8[512]{0}', space=smem, size = 0x200, scoped, tag = 'input window, operand 1, single buffered']
    #allocation5 [shape = 's32[2]{0}', space=sflag, size = 0x8, scoped, tag = 'scoped memory for tpu_custom_call.1']
    #allocation6 [shape = 's32[2]{0}', space=sflag, size = 0x8, scoped, tag = 'scoped memory for tpu_custom_call.1']
    #allocation7 [shape = 's32[2]{0}', space=sflag, size = 0x8, scoped, tag = 'scoped memory for tpu_custom_call.1']
    #allocation8 [shape = 'u8[8192]{0}', space=vmem, size = 0x2000, scoped, tag = 'input window, operand 2']
    #allocation9 [shape = 'u8[8192]{0}', space=vmem, size = 0x2000, scoped, tag = 'input window, operand 3']
    #allocation10 [shape = 's32[2]{0}', space=sflag, size = 0x8, scoped, tag = 'scoped memory for tpu_custom_call.1']
    #allocation11 [shape = 'u8[1024]{0}', space=vmem, size = 0x400, scoped, tag = 'output window, operand 0']
    %10 = vsyncpa [#allocation7], 0
    %11 = vsyncpa [#allocation5], 0
    %s12 = scalar_lea.sflag [#allocation5], 1
    %13 = vsyncpa %s12, 0
    %14 = vsyncpa [#allocation10], 0
    %s15 = scalar_lea.sflag [#allocation10], 1
    %16 = vsyncpa %s15, 0
    %17 = vsyncpa [#allocation6], 0
    %s18 = scalar_lea.sflag [#allocation6], 1
    %19 = vsyncpa %s18, 0
    loop: start=0, step=1, limit=4
    $region2: #{tpu_custom_call.1} parent=1 // loop_pre_header
      _
    $region3: #{tpu_custom_call.1} parent=1 // loop_header
      %s21 = sphi 0, %s25
      %p22 = scmp.ge.s32.totalorder %s21, 4
      %s28 = sphi 0, %s40
      %s29 = sphi 0, %s36
      %s30 = sphi 0, %s28
      %s31 = sphi 0, %s29
      %s32 = sphi 0, %s30
      %s33 = sphi 0, %s31
      %s41 = sphi 0, %s41
      %s43 = sphi 0, %s41
      %s44 = sphi 0, %s43
      %s58 = sphi 0, %s44
      %s62 = sphi 0, %s62
      %s64 = sphi 0, %s62
      %s65 = sphi 0, %s64
      %s79 = sphi 0, %s65
      %s87 = sphi 0, %s89
      %s90 = sphi 0, %s87
      %s91 = sphi 0, %s90
      %s107 = sphi 0, %s91
      %s115 = sphi 0, %s117
      %s118 = sphi 0, %s115
      %s119 = sphi 0, %s118
      %s135 = sphi 0, %s119
      %s141 = sphi 0, %s143
      %s144 = sphi 0, %s141
      %s145 = sphi 0, %s144
      %s161 = sphi 0, %s145
    $region4: #{tpu_custom_call.1} parent=1 // loop_header_branch
      %24 = sbr.rel (%p22) target = $region8
    $region5: #{tpu_custom_call.1} parent=1 // loop_body
      %s26 = ssub.s32 %s21, 1
      %s27 = ssub.s32 %s21, 2
      %s34 = sadd.s32 1, %s29
      %p35 = scmp.ge.s32.totalorder %s34, 1
      %s36 = scalar_select %p35, 0, %s34
      %s37 = sadd.s32 1, %s28
      %s38 = scalar_select %p35, %s37, %s28
      %p39 = scmp.ge.s32.totalorder %s38, 2
      %s40 = scalar_select %p39, 0, %s38
      %s42 = sadd.s32 %s41, 1
      %p45 = scmp.eq.s32.totalorder %s21, 1
      %p46 = scmp.ne.s32.totalorder %s41, %s43
      %p47 = scmp.eq.s32.totalorder %s21, 0
      %p48 = por %p46, %p47
      %p49 = scmp.ne.s32.totalorder %s41, %s43
      %p50 = scmp.eq.s32.totalorder %s26, 1
      %p51 = por %p49, %p50
      %p52 = scmp.ne.s32.totalorder %s43, %s44
      %p53 = scmp.eq.s32.totalorder %s26, 0
      %p54 = por %p52, %p53
      %p55 = scmp.ne.s32.totalorder %s43, %s44
      %p56 = scmp.eq.s32.totalorder %s27, 1
      %p57 = por %p55, %p56
      %p59 = scmp.ne.s32.totalorder %s44, %s58
      %p60 = scmp.eq.s32.totalorder %s27, 0
      %p61 = por %p59, %p60
      %s63 = sadd.s32 %s62, 1
      %p66 = scmp.eq.s32.totalorder %s21, 1
      %p67 = scmp.ne.s32.totalorder %s62, %s64
      %p68 = scmp.eq.s32.totalorder %s21, 0
      %p69 = por %p67, %p68
      %p70 = scmp.ne.s32.totalorder %s62, %s64
      %p71 = scmp.eq.s32.totalorder %s26, 1
      %p72 = por %p70, %p71
      %p73 = scmp.ne.s32.totalorder %s64, %s65
      %p74 = scmp.eq.s32.totalorder %s26, 0
      %p75 = por %p73, %p74
      %p76 = scmp.ne.s32.totalorder %s64, %s65
      %p77 = scmp.eq.s32.totalorder %s27, 1
      %p78 = por %p76, %p77
      %p80 = scmp.ne.s32.totalorder %s65, %s79
      %p81 = scmp.eq.s32.totalorder %s27, 0
      %p82 = por %p80, %p81
      %s83 = ssub.s32 %s28, %s40
      %s84 = ssub.s32 %s29, %s36
      %s85 = sor.u32 %s83, %s84
      %p86 = scmp.eq.s32.totalorder %s85, 0
      %s88 = sadd.s32 %s87, 1
      %s89 = scalar_select %p86, %s87, %s88
      %p92 = pneg %p86
      %p93 = scmp.eq.s32.totalorder %s21, 1
      %p94 = por %p92, %p93
      %p95 = scmp.ne.s32.totalorder %s87, %s90
      %p96 = scmp.eq.s32.totalorder %s21, 0
      %p97 = por %p95, %p96
      %p98 = scmp.ne.s32.totalorder %s87, %s90
      %p99 = scmp.eq.s32.totalorder %s26, 1
      %p100 = por %p98, %p99
      %p101 = scmp.ne.s32.totalorder %s90, %s91
      %p102 = scmp.eq.s32.totalorder %s26, 0
      %p103 = por %p101, %p102
      %p104 = scmp.ne.s32.totalorder %s90, %s91
      %p105 = scmp.eq.s32.totalorder %s27, 1
      %p106 = por %p104, %p105
      %p108 = scmp.ne.s32.totalorder %s91, %s107
      %p109 = scmp.eq.s32.totalorder %s27, 0
      %p110 = por %p108, %p109
      %s111 = ssub.s32 %s28, %s40
      %s112 = ssub.s32 %s29, %s36
      %s113 = sor.u32 %s111, %s112
      %p114 = scmp.eq.s32.totalorder %s113, 0
      %s116 = sadd.s32 %s115, 1
      %s117 = scalar_select %p114, %s115, %s116
      %p120 = pneg %p114
      %p121 = scmp.eq.s32.totalorder %s21, 1
      %p122 = por %p120, %p121
      %p123 = scmp.ne.s32.totalorder %s115, %s118
      %p124 = scmp.eq.s32.totalorder %s21, 0
      %p125 = por %p123, %p124
      %p126 = scmp.ne.s32.totalorder %s115, %s118
      %p127 = scmp.eq.s32.totalorder %s26, 1
      %p128 = por %p126, %p127
      %p129 = scmp.ne.s32.totalorder %s118, %s119
      %p130 = scmp.eq.s32.totalorder %s26, 0
      %p131 = por %p129, %p130
      %p132 = scmp.ne.s32.totalorder %s118, %s119
      %p133 = scmp.eq.s32.totalorder %s27, 1
      %p134 = por %p132, %p133
      %p136 = scmp.ne.s32.totalorder %s119, %s135
      %p137 = scmp.eq.s32.totalorder %s27, 0
      %p138 = por %p136, %p137
      %s139 = ssub.s32 %s28, %s40
      %p140 = scmp.eq.s32.totalorder %s139, 0
      %s142 = sadd.s32 %s141, 1
      %s143 = scalar_select %p140, %s141, %s142
      %p146 = pneg %p140
      %p147 = scmp.eq.s32.totalorder %s21, 1
      %p148 = por %p146, %p147
      %p149 = scmp.ne.s32.totalorder %s141, %s144
      %p150 = scmp.eq.s32.totalorder %s21, 0
      %p151 = por %p149, %p150
      %p152 = scmp.ne.s32.totalorder %s141, %s144
      %p153 = scmp.eq.s32.totalorder %s26, 1
      %p154 = por %p152, %p153
      %p155 = scmp.ne.s32.totalorder %s144, %s145
      %p156 = scmp.eq.s32.totalorder %s26, 0
      %p157 = por %p155, %p156
      %p158 = scmp.ne.s32.totalorder %s144, %s145
      %p159 = scmp.eq.s32.totalorder %s27, 1
      %p160 = por %p158, %p159
      %p162 = scmp.ne.s32.totalorder %s145, %s161
      %p163 = scmp.eq.s32.totalorder %s27, 0
      %p164 = por %p162, %p163
      %p165 = scmp.le.s32.totalorder 1, %s21
      %p166 = scmp.lt.s32.totalorder %s21, 3
      %p167 = pnand %p165, %p166
      %p168 = pneg %p167
      // Predicated region
      $region9: #{tpu_custom_call.1} parent=5 // pred_check
        _
      $region10: #{tpu_custom_call.1} parent=5 // pred_check_branch
        %170 = sbr.rel (%p167) target = $region12
      $region11: #{tpu_custom_call.1} parent=5 // pred_region
        %s171 = ssub.s32 %s21, 1
        // Predicated region
        $region13: #{tpu_custom_call.1} parent=11 // pred_check
          %p172 = pneg %p54
        $region14: #{tpu_custom_call.1} parent=11 // pred_check_branch
          %174 = sbr.rel (%p172) target = $region16
        $region15: #{tpu_custom_call.1} parent=11 // pred_region
          _
        $region16: #{tpu_custom_call.1} parent=11 // pred_fallthru
          _
        // Predicated region
        $region17: #{tpu_custom_call.1} parent=11 // pred_check
          %p175 = pneg %p75
        $region18: #{tpu_custom_call.1} parent=11 // pred_check_branch
          %177 = sbr.rel (%p175) target = $region20
        $region19: #{tpu_custom_call.1} parent=11 // pred_region
          %s179 = ssub.s32 16, 16
          %180 = vsyncadd [#allocation7], %s179
          %s182 = sshll.u32 %s1, 4
          %s183 = int_to_ptr.vmem [resolvable:$true] %s182
          %185 = dma.vmem_to_smem %s183, 16, [#allocation4], [#allocation7]
        $region20: #{tpu_custom_call.1} parent=11 // pred_fallthru
          _
      $region12: #{tpu_custom_call.1} parent=5 // pred_fallthru
        _
      %p186 = scmp.lt.s32.totalorder %s21, 2
      // Predicated region
      $region21: #{tpu_custom_call.1} parent=5 // pred_check
        %p187 = pneg %p186
      $region22: #{tpu_custom_call.1} parent=5 // pred_check_branch
        %189 = sbr.rel (%p187) target = $region24
      $region23: #{tpu_custom_call.1} parent=5 // pred_region
        // Predicated region
        $region25: #{tpu_custom_call.1} parent=23 // pred_check
          %p190 = pneg %p97
        $region26: #{tpu_custom_call.1} parent=23 // pred_check_branch
          %192 = sbr.rel (%p190) target = $region28
        $region27: #{tpu_custom_call.1} parent=23 // pred_region
          %s193 = sand.u32 %s87, 1
          %s194 = scalar_lea.sflag [#allocation5], %s193
          %s195 = sand.u32 %s87, 1
          %s196 = smul.addr %s195, 8
          %s197 = scalar_lea.vmem [#allocation8], %s196
          %s199 = ssub.s32 128, 128
          %200 = vsyncadd %s194, %s199
          %s201 = smul.addr %s28, 4
          %s202 = sadd.s32 %s29, %s201
          %s203 = smul.addr %s202, 32
          %s204 = scalar_lea.hbm %s2, %s203
          %s205 = sshll.u32 %s197, 4
          %s206 = int_to_ptr.vmem [resolvable:$true] %s205
          %211 = dma.hbm_to_vmem [thread:$0]  %s204, 128, %s206, %s194, 32, 32, 2
        $region28: #{tpu_custom_call.1} parent=23 // pred_fallthru
          _
        // Predicated region
        $region29: #{tpu_custom_call.1} parent=23 // pred_check
          %p212 = pneg %p125
        $region30: #{tpu_custom_call.1} parent=23 // pred_check_branch
          %214 = sbr.rel (%p212) target = $region32
        $region31: #{tpu_custom_call.1} parent=23 // pred_region
          %s215 = sand.u32 %s115, 1
          %s216 = scalar_lea.sflag [#allocation10], %s215
          %s217 = sand.u32 %s115, 1
          %s218 = smul.addr %s217, 8
          %s219 = scalar_lea.vmem [#allocation9], %s218
          %s221 = ssub.s32 128, 128
          %222 = vsyncadd %s216, %s221
          %s223 = smul.addr %s28, 4
          %s224 = sadd.s32 %s29, %s223
          %s225 = smul.addr %s224, 32
          %s226 = scalar_lea.hbm %s3, %s225
          %s227 = sshll.u32 %s219, 4
          %s228 = int_to_ptr.vmem [resolvable:$true] %s227
          %233 = dma.hbm_to_vmem [thread:$0]  %s226, 128, %s228, %s216, 32, 32, 2
        $region32: #{tpu_custom_call.1} parent=23 // pred_fallthru
          _
      $region24: #{tpu_custom_call.1} parent=5 // pred_fallthru
        _
      %p234 = scmp.le.s32.totalorder 1, %s21
      %p235 = scmp.lt.s32.totalorder %s21, 3
      %p236 = pnand %p234, %p235
      %p237 = pneg %p236
      // Predicated region
      $region33: #{tpu_custom_call.1} parent=5 // pred_check
        _
      $region34: #{tpu_custom_call.1} parent=5 // pred_check_branch
        %239 = sbr.rel (%p236) target = $region36
      $region35: #{tpu_custom_call.1} parent=5 // pred_region
        %s240 = ssub.s32 %s21, 1
        // Predicated region
        $region37: #{tpu_custom_call.1} parent=35 // pred_check
          %p241 = pneg %p75
        $region38: #{tpu_custom_call.1} parent=35 // pred_check_branch
          %243 = sbr.rel (%p241) target = $region40
        $region39: #{tpu_custom_call.1} parent=35 // pred_region
          %244 = dma.done [#allocation7], 16
        $region40: #{tpu_custom_call.1} parent=35 // pred_fallthru
          _
        %s245 = sand.u32 %s90, 1
        %s246 = scalar_lea.sflag [#allocation5], %s245
        %s247 = sand.u32 %s90, 1
        %s248 = smul.addr %s247, 8
        %s249 = scalar_lea.vmem [#allocation8], %s248
        // Predicated region
        $region41: #{tpu_custom_call.1} parent=35 // pred_check
          %p250 = pneg %p103
        $region42: #{tpu_custom_call.1} parent=35 // pred_check_branch
          %252 = sbr.rel (%p250) target = $region44
        $region43: #{tpu_custom_call.1} parent=35 // pred_region
          %253 = dma.done %s246, 128
        $region44: #{tpu_custom_call.1} parent=35 // pred_fallthru
          _
        %s254 = sand.u32 %s118, 1
        %s255 = scalar_lea.sflag [#allocation10], %s254
        %s256 = sand.u32 %s118, 1
        %s257 = smul.addr %s256, 8
        %s258 = scalar_lea.vmem [#allocation9], %s257
        // Predicated region
        $region45: #{tpu_custom_call.1} parent=35 // pred_check
          %p259 = pneg %p131
        $region46: #{tpu_custom_call.1} parent=35 // pred_check_branch
          %261 = sbr.rel (%p259) target = $region48
        $region47: #{tpu_custom_call.1} parent=35 // pred_region
          %262 = dma.done %s255, 128
        $region48: #{tpu_custom_call.1} parent=35 // pred_fallthru
          _
        %263 = sfence
        %p264 = pneg %p54
        %p265 = pneg %p51
        %p266 = pneg %p75
        %p267 = pneg %p72
        %s268 = sand.u32 %s90, 1
        %s269 = scalar_lea.sflag [#allocation5], %s268
        %s270 = sand.u32 %s90, 1
        %s271 = smul.addr %s270, 8
        %s272 = scalar_lea.vmem [#allocation8], %s271
        %p273 = pneg %p103
        %p274 = pneg %p100
        %s275 = sand.u32 %s118, 1
        %s276 = scalar_lea.sflag [#allocation10], %s275
        %s277 = sand.u32 %s118, 1
        %s278 = smul.addr %s277, 8
        %s279 = scalar_lea.vmem [#allocation9], %s278
        %p280 = pneg %p131
        %p281 = pneg %p128
        %p282 = pneg %p157
        %p283 = pneg %p154
        %s284 = sand.u32 %s144, 1
        %s285 = scalar_lea.sflag [#allocation6], %s284
        %s286 = sand.u32 %s144, 1
        %s287 = scalar_lea.vmem [#allocation11], %s286
        %p288 = scmp.eq.s32.totalorder %s31, 0
        // Predicated region
        $region49: #{tpu_custom_call.1} parent=35 // pred_check
          %p289 = pneg %p288
        $region50: #{tpu_custom_call.1} parent=35 // pred_check_branch
          %291 = sbr.rel (%p289) target = $region52
        $region51: #{tpu_custom_call.1} parent=35 // pred_region
          %292 = vst [vmem:[#allocation2] sm:$0x3] 0.0
        $region52: #{tpu_custom_call.1} parent=35 // pred_fallthru
          _
        %v293 = vld [vmem:[%s249] sm:$0x3]
        %v294 = vld [vmem:[%s249 + $0x2] sm:$0x3]
        %v295 = vld [vmem:[%s249 + $0x4] sm:$0x3]
        %v296 = vld [vmem:[%s249 + $0x6] sm:$0x3]
        %v297 = vld [vmem:[%s258] sm:$0x3]
        %v298 = vld [vmem:[%s258 + $0x2] sm:$0x3]
        %v299 = vld [vmem:[%s258 + $0x4] sm:$0x3]
        %v300 = vld [vmem:[%s258 + $0x6] sm:$0x3]
        %v301 = vsub.f32 %v293, %v297
        %v302 = vsub.f32 %v294, %v298
        %v303 = vsub.f32 %v295, %v299
        %v304 = vsub.f32 %v296, %v300
        %v305 = vmul.f32 %v301, %v301
        %v306 = vmul.f32 %v302, %v302
        %v307 = vmul.f32 %v303, %v303
        %v308 = vmul.f32 %v304, %v304
        %vm309 = vcmask 1041408
        %v310 = vsel %vm309, %v305, 0.0
        %v311 = vsel %vm309, %v306, 0.0
        %v312 = vadd.f32 %v310, %v311
        %v313 = vsel %vm309, %v307, 0.0
        %v314 = vadd.f32 %v312, %v313
        %v315 = vsel %vm309, %v308, 0.0
        %v316 = vadd.f32 %v314, %v315
        %s317 = sld [smem:[#allocation4 + %s30]]
        %s318 = sld [smem:[#allocation3]]
        %v319 = vrsqrt.pop %v316
        %v320 = vmul.f32 %v316, %v319
        %vm321 = vcmp.eq.f32.partialorder %v316, inf
        %v322 = vsel %vm321, %v316, %v320
        %vm323 = vcmp.eq.f32.partialorder %v316, 0.0
        %v324 = vand.u32 %v316, 2147483648
        %v325 = vsel %vm323, %v324, %v322
        %v326 = vstv %s318
        %v327 = vsub.f32 %v326, %v325
        %v328 = vmax.f32 %v327, 0.0
        %v329 = vstv %s317
        %v330 = vmul.f32 %v316, %v329
        %v331 = vmul.f32 %v328, %v328
        %s332 = ssub.f32 1.0, %s317
        %v333 = vstv %s332
        %v334 = vmul.f32 %v331, %v333
        %v335 = vadd.f32 %v330, %v334
        %v336 = vld [vmem:[#allocation2] sm:$0x3]
        %v337 = vadd.f32 %v336, %v335
        %338 = vst [vmem:[#allocation2] sm:$0x3] %v337
        // Predicated region
        $region53: #{tpu_custom_call.1} parent=35 // pred_check
          %p339 = pneg %p288
        $region54: #{tpu_custom_call.1} parent=35 // pred_check_branch
          %341 = sbr.rel (%p339) target = $region56
        $region55: #{tpu_custom_call.1} parent=35 // pred_region
          %v342 = vld [vmem:[#allocation2] sm:$0x3]
          %v343 = vsel %vm309, %v342, 0.0
          %v344 = vrot.slane %v343, 4
          %v345 = vadd.f32 %v343, %v344
          %v346 = vrot.slane %v345, 2
          %v347 = vadd.f32 %v345, %v346
          %v348 = vrot.slane %v347, 1
          %v349 = vadd.f32 %v347, %v348
          %350 = vst [vmem:[%s287] sm:$0x1] %v349
        $region56: #{tpu_custom_call.1} parent=35 // pred_fallthru
          _
        %s351 = sand.u32 %s144, 1
        %s352 = scalar_lea.sflag [#allocation6], %s351
        %s353 = sand.u32 %s144, 1
        %s354 = scalar_lea.vmem [#allocation11], %s353
        // Predicated region
        $region57: #{tpu_custom_call.1} parent=35 // pred_check
          %p355 = pneg %p154
        $region58: #{tpu_custom_call.1} parent=35 // pred_check_branch
          %357 = sbr.rel (%p355) target = $region60
        $region59: #{tpu_custom_call.1} parent=35 // pred_region
          %s359 = ssub.s32 16, 16
          %360 = vsyncadd %s352, %s359
          %s361 = smul.addr %s30, 16
          %s362 = scalar_lea.hbm %s4, %s361
          %s364 = sshll.u32 %s354, 4
          %s365 = int_to_ptr.vmem [resolvable:$true] %s364
          %367 = dma.vmem_to_hbm [thread:$0]  %s365, 16, %s362, %s352
        $region60: #{tpu_custom_call.1} parent=35 // pred_fallthru
          _
      $region36: #{tpu_custom_call.1} parent=5 // pred_fallthru
        _
      %p368 = scmp.le.s32.totalorder 2, %s21
      // Predicated region
      $region61: #{tpu_custom_call.1} parent=5 // pred_check
        %p369 = pneg %p368
      $region62: #{tpu_custom_call.1} parent=5 // pred_check_branch
        %371 = sbr.rel (%p369) target = $region64
      $region63: #{tpu_custom_call.1} parent=5 // pred_region
        %s372 = ssub.s32 %s21, 2
        // Predicated region
        $region65: #{tpu_custom_call.1} parent=63 // pred_check
          %p373 = pneg %p160
        $region66: #{tpu_custom_call.1} parent=63 // pred_check_branch
          %375 = sbr.rel (%p373) target = $region68
        $region67: #{tpu_custom_call.1} parent=63 // pred_region
          %s376 = sand.u32 %s145, 1
          %s377 = scalar_lea.sflag [#allocation6], %s376
          %s378 = sand.u32 %s145, 1
          %s379 = scalar_lea.vmem [#allocation11], %s378
          %380 = dma.done %s377, 16
        $region68: #{tpu_custom_call.1} parent=63 // pred_fallthru
          _
      $region64: #{tpu_custom_call.1} parent=5 // pred_fallthru
        _
    $region6: #{tpu_custom_call.1} parent=1 // loop_footer
      %s25 = sadd.s32 1, %s21
    $region7: #{tpu_custom_call.1} parent=1 // loop_footer_branch
      %20 = sbr.rel target = $region3
    $region8: #{tpu_custom_call.1} parent=1 // loop_exit
      _
    %381 = vsyncpa [#allocation5], 1
    %s382 = scalar_lea.sflag [#allocation5], 1
    %383 = vsyncpa %s382, 1
    %384 = vsyncpa [#allocation10], 1
    %s385 = scalar_lea.sflag [#allocation10], 1
    %386 = vsyncpa %s385, 1
    %387 = vsyncpa [#allocation6], 1
    %s388 = scalar_lea.sflag [#allocation6], 1
    %389 = vsyncpa %s388, 1
    %390 = vsyncpa [#allocation7], 1
    %s391 = scalar_lea.sflag [#allocation7], 1
    %392 = vsyncpa %s391, 1

</llo_original>
